<compile_context>
chip_gen: v7x
topology: tpu7x:2x2x1
jax: 0.10.0
libtpu: 0.0.40
codegen_flags: <defaults>
</compile_context>

<pallas_src>
import functools

import jax
import jax.numpy as jnp
from jax.experimental import pallas as pl
from jax.experimental.pallas import tpu as pltpu


def _random_delete_gate_kernel(n_ref, rank_ref, out_ref, *, scale):
    """Elementwise gate-mask construction.

    n_ref    : (1,)              i32 in SMEM (scalar prefetch) -- #positions to delete
    rank_ref : (blk_b, blk_s)    i32 in VMEM -- random permutation rank per position
    out_ref  : (blk_b, blk_s)    f32 in VMEM -- scale where rank < n, else 0
    """
    n = n_ref[0]
    out_ref[...] = jnp.where(rank_ref[...] < n,
                             jnp.float32(scale),
                             jnp.float32(0.0))


def _choose_block(dim, align, cap):
    """Largest multiple of `align` that divides `dim`, capped at `cap`.

    Falls back to the full extent when `dim` is not align-divisible (a block
    equal to the full array dim is always legal)."""
    if dim % align != 0:
        return dim
    best = align
    m = align
    limit = min(dim, cap)
    while m <= limit:
        if dim % m == 0:
            best = m
        m += align
    return best


@functools.partial(
    jax.jit,
    static_argnames=("sigmoid_mask_scale", "random_deletion_probability"))
def random_delete_gate(hidden_states, input_ids, key,
                       sigmoid_mask_scale=-30.0,
                       random_deletion_probability=0.5):
    """Pallas implementation of RandomDeleteGate.forward.

    hidden_states: (B, S, H)  -- only B, S are used (matches the PyTorch module)
    input_ids    : (B, S)     -- unused by the reference forward
    Returns (delete_gate_mask, delete_gate_mask), each of shape (B, S, 1) f32.
    """
    del input_ids  # unused in the reference forward as well
    B, S = hidden_states.shape[0], hidden_states.shape[1]
    total = B * S

    k_pct, k_perm = jax.random.split(key)

    # deletion_percentage ~ N(p, 0.05); everything stays on device / traced.
    pct = (random_deletion_probability
           + 0.05 * jax.random.normal(k_pct, (), dtype=jnp.float32))
    # int(pct * total), clamped to [0, total]  (pct > 1 => delete everything,
    # matching the reference's randperm[:n] behavior for n >= total).
    n_deletions = jnp.clip((pct * total).astype(jnp.int32), 0, total)
    n_arr = jnp.reshape(n_deletions, (1,))

    # Random permutation of ranks 0..total-1: position selected iff rank < n.
    # Exactly-n, uniformly random subset == torch.randperm(total)[:n].
    ranks = jax.random.permutation(k_perm, total).astype(jnp.int32).reshape(B, S)

    # Block sizes: sublane-aligned batch tiles, lane-dense seq tiles, capped at
    # 256x1024 (1 MiB f32 per buffer) so double-buffered in+out stays ~4 MiB.
    blk_b = _choose_block(B, 8, 256)
    blk_s = _choose_block(S, 128, 1024)
    grid = (B // blk_b, S // blk_s)

    kernel = functools.partial(_random_delete_gate_kernel,
                               scale=float(sigmoid_mask_scale))

    mask_2d = pl.pallas_call(
        kernel,
        out_shape=jax.ShapeDtypeStruct((B, S), jnp.float32),
        grid_spec=pltpu.PrefetchScalarGridSpec(
            num_scalar_prefetch=1,
            grid=grid,
            in_specs=[pl.BlockSpec((blk_b, blk_s), lambda i, j, n: (i, j))],
            out_specs=pl.BlockSpec((blk_b, blk_s), lambda i, j, n: (i, j)),
        ),
        compiler_params=pltpu.CompilerParams(
            dimension_semantics=("parallel", "parallel")),
    )(n_arr, ranks)

    delete_gate_mask = mask_2d.reshape(B, S, 1)  # glue: trailing singleton dim
    return delete_gate_mask, delete_gate_mask


if __name__ == "__main__":
    key = jax.random.PRNGKey(0)
    k_h, k_ids, k_gate = jax.random.split(key, 3)

    B, S, H = 2, 8, 32
    hidden_states = jax.random.normal(k_h, (B, S, H), dtype=jnp.float32)
    input_ids = jax.random.randint(k_ids, (B, S), 0, 256, dtype=jnp.int32)

    sigmoid_mask_scale = -30.0
    random_deletion_probability = 0.5

    gate_mask, gate_mask2 = random_delete_gate(
        hidden_states, input_ids, k_gate,
        sigmoid_mask_scale=sigmoid_mask_scale,
        random_deletion_probability=random_deletion_probability)
    gate_mask = jax.block_until_ready(gate_mask)
    gate_mask2 = jax.block_until_ready(gate_mask2)

    # Sanity checks against the reference semantics.
    assert gate_mask.shape == (B, S, 1)
    assert gate_mask.dtype == jnp.float32
    assert bool(jnp.all(gate_mask == gate_mask2))
    # mask values are only {0, sigmoid_mask_scale}
    assert bool(jnp.all((gate_mask == 0.0) |
                        (gate_mask == jnp.float32(sigmoid_mask_scale))))
    # exactly n_deletions positions selected (recompute n the same way)
    k_pct_chk, _ = jax.random.split(k_gate)
    pct_chk = (random_deletion_probability
               + 0.05 * jax.random.normal(k_pct_chk, (), dtype=jnp.float32))
    n_expected = int(jnp.clip((pct_chk * (B * S)).astype(jnp.int32), 0, B * S))
    n_selected = int(jnp.sum(gate_mask == jnp.float32(sigmoid_mask_scale)))
    assert n_selected == n_expected, (n_selected, n_expected)

    print("KERNEL_OK")
</pallas_src>

<mosaic_0001>
module attributes {stable_mosaic.version = 11 : i64} {
  func.func @_random_delete_gate_kernel(%arg0: i32, %arg1: i32, %arg2: memref<1xi32, #tpu.memory_space<smem>>, %arg3: memref<2x8xi32, #tpu.memory_space<vmem>>, %arg4: memref<2x8xf32, #tpu.memory_space<vmem>>) attributes {dimension_semantics = [#tpu.dimension_semantics<parallel>, #tpu.dimension_semantics<parallel>], iteration_bounds = array<i64: 1, 1>, scalar_prefetch = 1 : i64, scratch_operands = 0 : i64, tpu.core_type = #tpu.core_type<tc>, window_params = [{transform_indices = @transform_0, window_bounds = array<i64: 2, 8>}, {transform_indices = @transform_1, window_bounds = array<i64: 2, 8>}]} {
    %c0 = arith.constant 0 : index
    %0 = memref.load %arg2[%c0] : memref<1xi32, #tpu.memory_space<smem>>
    %c0_0 = arith.constant 0 : index
    %c0_1 = arith.constant 0 : index
    %1 = vector.load %arg3[%c0_0, %c0_1] : memref<2x8xi32, #tpu.memory_space<vmem>>, vector<2x8xi32>
    %2 = vector.broadcast %0 : i32 to vector<2x8xi32>
    %3 = arith.cmpi slt, %1, %2 : vector<2x8xi32>
    %cst = arith.constant -3.000000e+01 : f32
    %cst_2 = arith.constant 0.000000e+00 : f32
    %4 = vector.broadcast %cst : f32 to vector<2x8xf32>
    %5 = vector.broadcast %cst_2 : f32 to vector<2x8xf32>
    %6 = arith.select %3, %4, %5 : vector<2x8xi1>, vector<2x8xf32>
    %c0_3 = arith.constant 0 : index
    %c0_4 = arith.constant 0 : index
    %7 = vector.load %arg4[%c0_3, %c0_4] : memref<2x8xf32, #tpu.memory_space<vmem>>, vector<2x8xf32>
    tpu.vector_store %arg4[%c0_3, %c0_4], %6 {strides = array<i32>} : memref<2x8xf32, #tpu.memory_space<vmem>>, vector<2x8xf32>,
    return
  }
  func.func @transform_0(%arg0: i32, %arg1: i32, %arg2: memref<1xi32, #tpu.memory_space<smem>>) -> (i32, i32) {
    %c0_i32 = arith.constant 0 : i32
    return %arg0, %arg1 : i32, i32
  }
  func.func @transform_1(%arg0: i32, %arg1: i32, %arg2: memref<1xi32, #tpu.memory_space<smem>>) -> (i32, i32) {
    %c0_i32 = arith.constant 0 : i32
    return %arg0, %arg1 : i32, i32
  }
}

</mosaic_0001>

<llo_original>
// kernel: random_delete_gate.1
$region0: #{random_delete_gate.1}
  #allocation0 [shape = 'u32[]', space=smem, size = 0x4, offset = 0x4, fixed_abs, tag = 'smem constant byte address 0x4 - core index']
  #allocation1 [shape = 'u32[144,128]{1,0:T(1,128)}', space=vmem, size = 0x12000, scoped, tag = 'internal scratch']
  #allocation2 [shape = 's32[1]{0}', space=sflag, size = 0x4, scoped, tag = 'scoped memory for random_delete_gate.1']
  #allocation3 [shape = 's32[1]{0:T(128)S(6)}', space=smem, size = 0x200, scoped, tag = 'prefetched SMEM operand 0']
  %s0 = inlined_call_operand.<no memory space> [shape: s32[1], index: 0, kind: input, shape index: {}]
  %s1 = inlined_call_operand.vmem [shape: s32[2,8], index: 1, kind: input, shape index: {}]
  %s2 = inlined_call_operand.vmem [shape: f32[2,8], index: 2, kind: output, shape index: {}]
  %s3 = sld [smem:[#allocation0]]
  $region14: #{random_delete_gate.1} parent=0
    _
  %s5 = ssub.s32 1, %s3
  %s6 = scalar_select 0, %s5, %s3
  %7 = sst [smem:[#allocation3]] %s0
  // Predicated region
  $region2: #{random_delete_gate.1} parent=0 // pred_check
    _
  $region3: #{random_delete_gate.1} parent=0 // pred_check_branch
    %9 = sbr.rel (0) target = $region5
  $region4: #{random_delete_gate.1} parent=0 // pred_region
    _
  $region5: #{random_delete_gate.1} parent=0 // pred_fallthru
    _
  %s10 = sld [smem:[#allocation3]]
  %v11 = vld [vmem:[%s1] sm:$0x3]
  %v12 = vstv %s10
  %vm13 = vcmp.lt.s32.totalorder %v11, %v12
  %v14 = vsel %vm13, -30.0, 0.0
  %vm15 = vcmask 58368
  %16 = vst.msk [vmem:[%s2] sm:$0x3] %vm15, %v14
  // Predicated region
  $region6: #{random_delete_gate.1} parent=0 // pred_check
    _
  $region7: #{random_delete_gate.1} parent=0 // pred_check_branch
    %18 = sbr.rel (0) target = $region9
  $region8: #{random_delete_gate.1} parent=0 // pred_region
    _
  $region9: #{random_delete_gate.1} parent=0 // pred_fallthru
    _
  // Predicated region
  $region10: #{random_delete_gate.1} parent=0 // pred_check
    _
  $region11: #{random_delete_gate.1} parent=0 // pred_check_branch
    %20 = sbr.rel (0) target = $region13
  $region12: #{random_delete_gate.1} parent=0 // pred_region
    _
  $region13: #{random_delete_gate.1} parent=0 // pred_fallthru
    _

</llo_original>
